<compile_context>
chip_gen: v7x
topology: tpu7x:2x2x1
jax: 0.10.0
libtpu: 0.0.40
codegen_flags: <defaults>
</compile_context>

<pallas_src>
import functools

import jax
import jax.numpy as jnp
from jax.experimental import pallas as pl
from jax.experimental.pallas import tpu as pltpu


def _round_up(x, m):
    return ((x + m - 1) // m) * m


# ----------------------------------------------------------------------------
# Pallas kernel: one row tile
#   logits[lanes 0..L)  = x @ W + b           (bf16 store, lane-dense)
#   tile_loss (lane 0)  = sum over tile of attention_mask * CE(logits, label)
# ----------------------------------------------------------------------------
def bert_softmax_kernel(x_ref, w_ref, b_ref, labels_ref, mask_ref,
                        out_ref, loss_ref, *, num_labels, num_rows, tile_rows):
    x = x_ref[...]                       # (TM, H)  bf16
    w = w_ref[...]                       # (H, LP)  bf16  (resident)
    b = b_ref[...]                       # (1, LP)  f32   (resident)

    # Linear head on the MXU, f32 accumulate.
    logits = jnp.dot(x, w, preferred_element_type=jnp.float32) + b   # (TM, LP)

    lane_ids = jax.lax.broadcasted_iota(jnp.int32, logits.shape, 1)
    lane_valid = lane_ids < num_labels   # real label lanes

    # Ragged last tile: rows >= num_rows were read out-of-bounds (garbage bf16,
    # possibly inf/NaN).  Zero them BEFORE any exp/logsumexp.
    ragged = (num_rows % tile_rows) != 0
    if ragged:
        row_ids = (pl.program_id(0) * tile_rows
                   + jax.lax.broadcasted_iota(jnp.int32, (tile_rows, 1), 0))
        row_valid = row_ids < num_rows                     # (TM, 1) bool
        logits = jnp.where(row_valid, logits, 0.0)

    # CrossEntropyLoss(reduction='none') per token (pad lanes excluded):
    #   ce = logsumexp(logits[:L]) - logits[label]
    masked_logits = jnp.where(lane_valid, logits, -jnp.inf)
    m = jnp.max(masked_logits, axis=-1, keepdims=True)
    lse = m + jnp.log(jnp.sum(jnp.exp(masked_logits - m), axis=-1,
                              keepdims=True))

    lbl = labels_ref[...]                # (TM, 1) int32
    onehot = jnp.logical_and(lane_ids == lbl, lane_valid).astype(jnp.float32)
    label_logit = jnp.sum(logits * onehot, axis=-1, keepdims=True)

    ce = lse - label_logit               # (TM, 1)
    tok_loss = mask_ref[...] * ce        # (TM, 1)  attention-mask weighted
    if ragged:
        # jnp.where (select) so NaN from garbage mask/ce rows cannot leak.
        tok_loss = jnp.where(row_valid, tok_loss, 0.0)

    # Lane-dense bf16 logits store (pad lanes zero).
    out_ref[...] = jnp.where(lane_valid, logits, 0.0).astype(out_ref.dtype)

    # Per-tile partial loss: scalar sum placed in lane 0 of a (1, 128) block.
    tile_sum = jnp.sum(tok_loss, keepdims=True)            # (1, 1) f32
    lane0 = jax.lax.broadcasted_iota(jnp.int32, (1, 128), 1) == 0
    loss_ref[...] = jnp.where(lane0, tile_sum, 0.0)


def linear_and_masked_ce(hidden, w_pad, b_pad, label_ids, attention_masks,
                         num_labels):
    """hidden: [B,S,H] bf16; w_pad: [H,LP] bf16; b_pad: [1,LP] f32."""
    B, S, H = hidden.shape
    BS = B * S
    L = num_labels
    LP = w_pad.shape[1]                  # lane-dense multiple of 128

    # Row tile: large (amortize per-grid-step overhead, big DMAs) but keep
    # >= 2 tiles when possible so the "parallel" axis feeds both v7x TCs.
    TM = _round_up(BS, 16)
    if BS > 16:
        TM = min(TM, _round_up((BS + 1) // 2, 16))
    TM = min(TM, 2048)
    num_tiles = pl.cdiv(BS, TM)          # last tile may be ragged (no x pad!)

    x = hidden.reshape(BS, H)                                   # bf16
    lbl = label_ids.reshape(BS, 1).astype(jnp.int32)
    msk = attention_masks.reshape(BS, 1).astype(jnp.float32)

    cost = pl.CostEstimate(
        flops=2 * BS * H * LP,
        transcendentals=BS * LP,
        bytes_accessed=BS * H * 2 + BS * LP * 2 + H * LP * 2 + BS * 8,
    )

    logits_packed, tile_loss = pl.pallas_call(
        functools.partial(bert_softmax_kernel, num_labels=L,
                          num_rows=BS, tile_rows=TM),
        out_shape=(
            jax.ShapeDtypeStruct((BS, LP), jnp.bfloat16),        # logits (bf16)
            jax.ShapeDtypeStruct((1, 128 * num_tiles), jnp.float32),  # per-tile loss
        ),
        grid=(num_tiles,),
        in_specs=[
            pl.BlockSpec((TM, H), lambda i: (i, 0)),     # x: row-tiled (ragged OK)
            pl.BlockSpec((H, LP), lambda i: (0, 0)),     # W: resident
            pl.BlockSpec((1, LP), lambda i: (0, 0)),     # b: resident
            pl.BlockSpec((TM, 1), lambda i: (i, 0)),     # labels
            pl.BlockSpec((TM, 1), lambda i: (i, 0)),     # attention mask
        ],
        out_specs=(
            pl.BlockSpec((TM, LP), lambda i: (i, 0)),    # logits
            pl.BlockSpec((1, 128), lambda i: (0, i)),    # per-tile loss block
        ),
        compiler_params=pltpu.CompilerParams(
            dimension_semantics=("parallel",)),
        cost_estimate=cost,
    )(x, w_pad, b_pad, lbl, msk)

    token_logits = logits_packed[:, :L].reshape(B, S, L)
    # loss = (attention_masks * ce).sum(dim=-1).mean()  == total masked-CE / B
    loss = tile_loss.sum() / B           # only lane 0 of each tile is nonzero
    return token_logits, loss


# ----------------------------------------------------------------------------
# Deterministic synthetic "ptm_model" stub (BERT embedding front-end) + params
# ----------------------------------------------------------------------------
def make_params(key, vocab_size, type_vocab, max_pos, hidden, num_labels,
                initializer_range=0.02):
    ks = jax.random.split(key, 4)
    cls_w = initializer_range * jax.random.normal(
        ks[3], (num_labels, hidden), jnp.float32)
    cls_b = jnp.zeros((num_labels,), jnp.float32)
    LP = _round_up(num_labels, 128)
    params = {
        "word_emb": initializer_range * jax.random.normal(ks[0], (vocab_size, hidden), jnp.float32),
        "type_emb": initializer_range * jax.random.normal(ks[1], (type_vocab, hidden), jnp.float32),
        "pos_emb": initializer_range * jax.random.normal(ks[2], (max_pos, hidden), jnp.float32),
        # LayerNorm: weight=1, bias=0 (matches init_weight)
        "ln_w": jnp.ones((hidden,), jnp.float32),
        "ln_b": jnp.zeros((hidden,), jnp.float32),
        # Linear head: weight ~ N(0, initializer_range), bias = 0
        "cls_w": cls_w,
        "cls_b": cls_b,
        # Hoisted once at parameter prep: lane-padded transposed bf16 weight
        # and f32 bias for the kernel's resident W/b blocks (no per-call
        # pad/transpose in the wrapper).
        "cls_w_pad": jnp.zeros((hidden, LP), jnp.bfloat16).at[:, :num_labels]
                        .set(cls_w.T.astype(jnp.bfloat16)),
        "cls_b_pad": jnp.zeros((1, LP), jnp.float32).at[0, :num_labels].set(cls_b),
    }
    return params


def ptm_stub(params, input_ids, token_type_ids, position_ids):
    h = (params["word_emb"][input_ids]
         + params["type_emb"][token_type_ids]
         + params["pos_emb"][position_ids])
    mu = h.mean(-1, keepdims=True)
    var = ((h - mu) ** 2).mean(-1, keepdims=True)
    h = (h - mu) / jnp.sqrt(var + 1e-12)
    h = h * params["ln_w"] + params["ln_b"]
    # Emit bf16 so the hidden-state HBM round trip is half width.
    return h.astype(jnp.bfloat16)                   # last_hidden_state [B,S,H]


def bert_softmax_forward(params, input_ids, attention_masks, token_type_ids,
                         position_ids, label_ids=None):
    hidden = ptm_stub(params, input_ids, token_type_ids, position_ids)
    num_labels = params["cls_w"].shape[0]
    if label_ids is None:
        logits, _ = linear_and_masked_ce(
            hidden, params["cls_w_pad"], params["cls_b_pad"],
            jnp.zeros(input_ids.shape, jnp.int32), attention_masks, num_labels)
        return logits
    return linear_and_masked_ce(hidden, params["cls_w_pad"], params["cls_b_pad"],
                                label_ids, attention_masks, num_labels)


# ----------------------------------------------------------------------------
# Pure-JAX reference (f32) for a loose numerical check
# ----------------------------------------------------------------------------
def reference_forward(params, input_ids, attention_masks, token_type_ids,
                      position_ids, label_ids):
    hidden = ptm_stub(params, input_ids, token_type_ids,
                      position_ids).astype(jnp.float32)
    logits = hidden @ params["cls_w"].T + params["cls_b"]
    m = logits.max(-1, keepdims=True)
    lse = (m + jnp.log(jnp.exp(logits - m).sum(-1, keepdims=True)))[..., 0]
    lbl_logit = jnp.take_along_axis(logits, label_ids[..., None], axis=-1)[..., 0]
    ce = lse - lbl_logit
    loss = (attention_masks * ce).sum(-1).mean()
    return logits, loss


# ----------------------------------------------------------------------------
if __name__ == "__main__":
    VOCAB, TYPE_VOCAB, MAX_POS, NUM_LABELS = 100, 2, 16, 4
    H = 32

    key = jax.random.PRNGKey(0)
    kp, k1, k2, k3 = jax.random.split(key, 4)
    params = make_params(kp, VOCAB, TYPE_VOCAB, MAX_POS, H, NUM_LABELS)

    def run_case(B, S, mask_fn):
        input_ids = jax.random.randint(k1, (B, S), 0, VOCAB, dtype=jnp.int32)
        token_type_ids = jnp.zeros((B, S), jnp.int32)
        position_ids = jnp.broadcast_to(
            jnp.arange(S, dtype=jnp.int32)[None, :], (B, S))
        attention_masks = mask_fn(B, S)
        label_ids = jax.random.randint(k3, (B, S), 0, NUM_LABELS, dtype=jnp.int32)

        logits, loss = bert_softmax_forward(params, input_ids, attention_masks,
                                            token_type_ids, position_ids,
                                            label_ids)
        jax.block_until_ready((logits, loss))
        assert logits.shape == (B, S, NUM_LABELS)
        assert loss.shape == ()

        ref_logits, ref_loss = reference_forward(params, input_ids,
                                                 attention_masks,
                                                 token_type_ids, position_ids,
                                                 label_ids)
        assert jnp.allclose(logits.astype(jnp.float32), ref_logits,
                            atol=5e-2, rtol=5e-2), "logits mismatch"
        assert jnp.allclose(loss, ref_loss, atol=5e-2, rtol=5e-2), "loss mismatch"
        assert bool(jnp.isfinite(loss))
        return logits, loss

    # Case 1: B=2, S=8  (single exact tile).
    run_case(2, 8, lambda B, S: jnp.ones((B, S), jnp.float32))

    # Case 2: B=2, S=9  (ragged last tile + 2-tile grid, partial attention mask).
    run_case(2, 9, lambda B, S: jnp.broadcast_to(
        (jnp.arange(S) < 7).astype(jnp.float32), (B, S)))

    print("KERNEL_OK")
</pallas_src>

<mosaic_0001>
module attributes {stable_mosaic.version = 11 : i64} {
  func.func @bert_softmax_kernel(%arg0: i32, %arg1: memref<16x32xbf16, #tpu.memory_space<vmem>>, %arg2: memref<32x128xbf16, #tpu.memory_space<vmem>>, %arg3: memref<1x128xf32, #tpu.memory_space<vmem>>, %arg4: memref<16x1xi32, #tpu.memory_space<vmem>>, %arg5: memref<16x1xf32, #tpu.memory_space<vmem>>, %arg6: memref<16x128xbf16, #tpu.memory_space<vmem>>, %arg7: memref<1x128xf32, #tpu.memory_space<vmem>>) attributes {dimension_semantics = [#tpu.dimension_semantics<parallel>], iteration_bounds = array<i64: 1>, scalar_prefetch = 0 : i64, scratch_operands = 0 : i64, tpu.core_type = #tpu.core_type<tc>, window_params = [{transform_indices = @transform_0, window_bounds = array<i64: 16, 32>}, {pipeline_mode = #tpu.pipeline_mode<synchronous>, transform_indices = @transform_1, window_bounds = array<i64: 32, 128>}, {pipeline_mode = #tpu.pipeline_mode<synchronous>, transform_indices = @transform_2, window_bounds = array<i64: 1, 128>}, {transform_indices = @transform_3, window_bounds = array<i64: 16, 1>}, {transform_indices = @transform_4, window_bounds = array<i64: 16, 1>}, {transform_indices = @transform_5, window_bounds = array<i64: 16, 128>}, {transform_indices = @transform_6, window_bounds = array<i64: 1, 128>}]} {
    %c0 = arith.constant 0 : index
    %c0_0 = arith.constant 0 : index
    %0 = vector.load %arg1[%c0, %c0_0] : memref<16x32xbf16, #tpu.memory_space<vmem>>, vector<16x32xbf16>
    %c0_1 = arith.constant 0 : index
    %c0_2 = arith.constant 0 : index
    %1 = vector.load %arg2[%c0_1, %c0_2] : memref<32x128xbf16, #tpu.memory_space<vmem>>, vector<32x128xbf16>
    %c0_3 = arith.constant 0 : index
    %c0_4 = arith.constant 0 : index
    %2 = vector.load %arg3[%c0_3, %c0_4] : memref<1x128xf32, #tpu.memory_space<vmem>>, vector<1x128xf32>
    %cst = arith.constant dense<0.000000e+00> : vector<16x128xf32>
    %3 = tpu.matmul %0, %1, %cst {dimension_numbers = #tpu.dot_dimension_numbers<[1], [0], [0], [1], [0, 0, 1, 1], [], []>} : vector<16x32xbf16>, vector<32x128xbf16>, vector<16x128xf32> -> vector<16x128xf32>
    %4 = vector.broadcast %2 : vector<1x128xf32> to vector<16x128xf32>
    %5 = arith.addf %3, %4 : vector<16x128xf32>
    %6 = tpu.iota {dimensions = array<i32: 1>} : vector<16x128xi32>
    %c4_i32 = arith.constant 4 : i32
    %7 = vector.broadcast %c4_i32 : i32 to vector<16x128xi32>
    %8 = arith.cmpi slt, %6, %7 : vector<16x128xi32>
    %cst_5 = arith.constant 0xFF800000 : f32
    %9 = vector.broadcast %cst_5 : f32 to vector<16x128xf32>
    %10 = arith.select %8, %5, %9 : vector<16x128xi1>, vector<16x128xf32>
    %cst_6 = arith.constant dense<0xFF800000> : vector<16xf32>
    %11 = vector.multi_reduction <maximumf>, %10, %cst_6 [1] : vector<16x128xf32> to vector<16xf32>
    %12 = vector.shape_cast %11 : vector<16xf32> to vector<16x1xf32>
    %13 = vector.broadcast %12 : vector<16x1xf32> to vector<16x128xf32>
    %14 = arith.subf %10, %13 : vector<16x128xf32>
    %15 = math.exp %14 : vector<16x128xf32>
    %cst_7 = arith.constant dense<0.000000e+00> : vector<16xf32>
    %16 = vector.multi_reduction <add>, %15, %cst_7 [1] : vector<16x128xf32> to vector<16xf32>
    %17 = vector.shape_cast %16 : vector<16xf32> to vector<16x1xf32>
    %18 = math.log %17 : vector<16x1xf32>
    %19 = arith.addf %12, %18 : vector<16x1xf32>
    %c0_8 = arith.constant 0 : index
    %c0_9 = arith.constant 0 : index
    %20 = vector.load %arg4[%c0_8, %c0_9] : memref<16x1xi32, #tpu.memory_space<vmem>>, vector<16x1xi32>
    %21 = vector.broadcast %20 : vector<16x1xi32> to vector<16x128xi32>
    %22 = arith.cmpi eq, %6, %21 : vector<16x128xi32>
    %23 = arith.andi %22, %8 : vector<16x128xi1>
    %24 = arith.extui %23 : vector<16x128xi1> to vector<16x128xi32>
    %25 = arith.sitofp %24 : vector<16x128xi32> to vector<16x128xf32>
    %26 = arith.mulf %5, %25 : vector<16x128xf32>
    %cst_10 = arith.constant dense<0.000000e+00> : vector<16xf32>
    %27 = vector.multi_reduction <add>, %26, %cst_10 [1] : vector<16x128xf32> to vector<16xf32>
    %28 = vector.shape_cast %27 : vector<16xf32> to vector<16x1xf32>
    %29 = arith.subf %19, %28 : vector<16x1xf32>
    %c0_11 = arith.constant 0 : index
    %c0_12 = arith.constant 0 : index
    %30 = vector.load %arg5[%c0_11, %c0_12] : memref<16x1xf32, #tpu.memory_space<vmem>>, vector<16x1xf32>
    %31 = arith.mulf %30, %29 : vector<16x1xf32>
    %cst_13 = arith.constant 0.000000e+00 : f32
    %32 = vector.broadcast %cst_13 : f32 to vector<16x128xf32>
    %33 = arith.select %8, %5, %32 : vector<16x128xi1>, vector<16x128xf32>
    %34 = arith.truncf %33 : vector<16x128xf32> to vector<16x128xbf16>
    %c0_14 = arith.constant 0 : index
    %c0_15 = arith.constant 0 : index
    %35 = vector.load %arg6[%c0_14, %c0_15] : memref<16x128xbf16, #tpu.memory_space<vmem>>, vector<16x128xbf16>
    tpu.vector_store %arg6[%c0_14, %c0_15], %34 {strides = array<i32>} : memref<16x128xbf16, #tpu.memory_space<vmem>>, vector<16x128xbf16>,
    %36 = vector.shape_cast %31 : vector<16x1xf32> to vector<1x16x1xf32>
    %cst_16 = arith.constant dense<0.000000e+00> : vector<1xf32>
    %37 = vector.multi_reduction <add>, %36, %cst_16 [1, 2] : vector<1x16x1xf32> to vector<1xf32>
    %38 = vector.shape_cast %37 : vector<1xf32> to vector<1x1x1xf32>
    %39 = vector.extract %38[0, 0, 0] : f32 from vector<1x1x1xf32>
    %40 = vector.broadcast %39 : f32 to vector<1x1xf32>
    %41 = tpu.iota {dimensions = array<i32: 1>} : vector<1x128xi32>
    %c0_i32 = arith.constant 0 : i32
    %42 = vector.broadcast %c0_i32 : i32 to vector<1x128xi32>
    %43 = arith.cmpi eq, %41, %42 : vector<1x128xi32>
    %cst_17 = arith.constant 0.000000e+00 : f32
    %44 = vector.shape_cast %40 : vector<1x1xf32> to vector<1x1xf32>
    %45 = vector.broadcast %44 : vector<1x1xf32> to vector<1x128xf32>
    %46 = vector.broadcast %cst_17 : f32 to vector<1x128xf32>
    %47 = arith.select %43, %45, %46 : vector<1x128xi1>, vector<1x128xf32>
    %c0_18 = arith.constant 0 : index
    %c0_19 = arith.constant 0 : index
    %48 = vector.load %arg7[%c0_18, %c0_19] : memref<1x128xf32, #tpu.memory_space<vmem>>, vector<1x128xf32>
    tpu.vector_store %arg7[%c0_18, %c0_19], %47 {strides = array<i32>} : memref<1x128xf32, #tpu.memory_space<vmem>>, vector<1x128xf32>,
    return
  }
  func.func @transform_0(%arg0: i32) -> (i32, i32) {
    %c0_i32 = arith.constant 0 : i32
    %c0_i32_0 = arith.constant 0 : i32
    return %arg0, %c0_i32 : i32, i32
  }
  func.func @transform_1(%arg0: i32) -> (i32, i32) {
    %c0_i32 = arith.constant 0 : i32
    %c0_i32_0 = arith.constant 0 : i32
    %c0_i32_1 = arith.constant 0 : i32
    return %c0_i32, %c0_i32_0 : i32, i32
  }
  func.func @transform_2(%arg0: i32) -> (i32, i32) {
    %c0_i32 = arith.constant 0 : i32
    %c0_i32_0 = arith.constant 0 : i32
    %c0_i32_1 = arith.constant 0 : i32
    return %c0_i32, %c0_i32_0 : i32, i32
  }
  func.func @transform_3(%arg0: i32) -> (i32, i32) {
    %c0_i32 = arith.constant 0 : i32
    %c0_i32_0 = arith.constant 0 : i32
    return %arg0, %c0_i32 : i32, i32
  }
  func.func @transform_4(%arg0: i32) -> (i32, i32) {
    %c0_i32 = arith.constant 0 : i32
    %c0_i32_0 = arith.constant 0 : i32
    return %arg0, %c0_i32 : i32, i32
  }
  func.func @transform_5(%arg0: i32) -> (i32, i32) {
    %c0_i32 = arith.constant 0 : i32
    %c0_i32_0 = arith.constant 0 : i32
    return %arg0, %c0_i32 : i32, i32
  }
  func.func @transform_6(%arg0: i32) -> (i32, i32) {
    %c0_i32 = arith.constant 0 : i32
    %c0_i32_0 = arith.constant 0 : i32
    return %c0_i32, %arg0 : i32, i32
  }
}

</mosaic_0001>

<llo_original>
// kernel: tpu_custom_call.1
$region0: #{tpu_custom_call.1}
  #allocation0 [shape = 'u32[]', space=smem, size = 0x4, offset = 0x4, fixed_abs, tag = 'smem constant byte address 0x4 - core index']
  #allocation1 [shape = 'u32[144,128]{1,0:T(1,128)}', space=vmem, size = 0x12000, scoped, tag = 'internal scratch']
  %s0 = inlined_call_operand.vmem [shape: bf16[16,32], index: 0, kind: input, shape index: {}]
  %s1 = inlined_call_operand.vmem [shape: bf16[32,128], index: 1, kind: input, shape index: {}]
  %s2 = inlined_call_operand.vmem [shape: f32[1,128], index: 2, kind: input, shape index: {}]
  %s3 = inlined_call_operand.vmem [shape: s32[16,1], index: 3, kind: input, shape index: {}]
  %s4 = inlined_call_operand.vmem [shape: f32[16,1], index: 4, kind: input, shape index: {}]
  %s5 = inlined_call_operand.hbm [shape: bf16[16,128], index: 5, kind: output, shape index: {0}]
  %s6 = inlined_call_operand.hbm [shape: f32[1,128], index: 6, kind: output, shape index: {1}]
  %7 = xla_tuple %s5, %s6
  %s8 = sld [smem:[#allocation0]]
  $region38: #{tpu_custom_call.1} parent=0
    _
  %s10 = ssub.s32 1, %s8
  %s11 = scalar_select 0, %s10, %s8
  $region1: #{tpu_custom_call.1} parent=0
    #allocation2 [shape = 'u8[4096]{0}', space=vmem, size = 0x1000, scoped, tag = 'output window, operand 0, single buffered']
    #allocation3 [shape = 's32[1]{0}', space=sflag, size = 0x4, scoped, tag = 'scoped memory for tpu_custom_call.1']
    #allocation4 [shape = 'u8[512]{0}', space=vmem, size = 0x400, scoped, tag = 'output window, operand 1, single buffered']
    #allocation5 [shape = 's32[1]{0}', space=sflag, size = 0x4, scoped, tag = 'scoped memory for tpu_custom_call.1']
    %12 = vsyncpa [#allocation3], 0
    %13 = vsyncpa [#allocation5], 0
    // Predicated region
    $region2: #{tpu_custom_call.1} parent=1 // pred_check
      _
    $region3: #{tpu_custom_call.1} parent=1 // pred_check_branch
      %15 = sbr.rel (0) target = $region5
    $region4: #{tpu_custom_call.1} parent=1 // pred_region
      _
    $region5: #{tpu_custom_call.1} parent=1 // pred_fallthru
      _
    // Predicated region
    $region6: #{tpu_custom_call.1} parent=1 // pred_check
      _
    $region7: #{tpu_custom_call.1} parent=1 // pred_check_branch
      %17 = sbr.rel (0) target = $region9
    $region8: #{tpu_custom_call.1} parent=1 // pred_region
      _
    $region9: #{tpu_custom_call.1} parent=1 // pred_fallthru
      _
    // Predicated region
    $region10: #{tpu_custom_call.1} parent=1 // pred_check
      _
    $region11: #{tpu_custom_call.1} parent=1 // pred_check_branch
      %19 = sbr.rel (0) target = $region13
    $region12: #{tpu_custom_call.1} parent=1 // pred_region
      _
    $region13: #{tpu_custom_call.1} parent=1 // pred_fallthru
      _
    // Predicated region
    $region14: #{tpu_custom_call.1} parent=1 // pred_check
      _
    $region15: #{tpu_custom_call.1} parent=1 // pred_check_branch
      %21 = sbr.rel (0) target = $region17
    $region16: #{tpu_custom_call.1} parent=1 // pred_region
      _
    $region17: #{tpu_custom_call.1} parent=1 // pred_fallthru
      _
    // Predicated region
    $region18: #{tpu_custom_call.1} parent=1 // pred_check
      _
    $region19: #{tpu_custom_call.1} parent=1 // pred_check_branch
      %23 = sbr.rel (0) target = $region21
    $region20: #{tpu_custom_call.1} parent=1 // pred_region
      _
    $region21: #{tpu_custom_call.1} parent=1 // pred_fallthru
      _
    %v25 = vld [vmem:[%s0] sm:$0xf]
    %v26 = vld [vmem:[%s0 + $0x4] sm:$0xf]
    %v27 = vld [vmem:[%s1] sm:$0xf]
    %v28 = vld [vmem:[%s1 + $0x4] sm:$0xf]
    %v29 = vld [vmem:[%s1 + $0x8] sm:$0xf]
    %v30 = vld [vmem:[%s1 + $0xc] sm:$0xf]
    %v31 = vld [vmem:[%s2] sm:$0x1]
    %v33 = vlaneseq
    %v34 = vshrl.u32 %v33, 7
    %v35 = vsub.s32 0, %v34
    %v36 = vrot.slane %v31, %v35
    %v40 = vunpack.c.l.b16 %v25
    %v41 = vunpack.c.l.b16 %v26
    %v42 = vpack.c.b16 %v41, %v40
    %v47 = vunpack.c.l.b16 %v27
    %v48 = vunpack.c.l.b16 %v28
    %v49 = vunpack.c.l.b16 %v29
    %v50 = vunpack.c.l.b16 %v30
    %v51 = vpack.c.b16 %v48, %v47
    %v52 = vpack.c.b16 %v50, %v49
    %vm55 = vcmask 261120
    %v57 = vsel %vm55, %v42, 0
    %59 = vmatprep.subr.bf16.mxu0 0
    %60 = vmatpush1.bf16.msra.mxu0 %v51
    %61 = vmatprep.subr.bf16.mxu0 0
    %62 = vmatpush1.bf16.msra.mxu0 %v52
    %63 = vmatprep.subr.bf16.mxu0 0
    %64 = vmatpush1.bf16.msra.mxu0 0
    %65 = vmatprep.subr.bf16.mxu0 0
    %66 = vmatpush1.bf16.msra.mxu0 0
    %67 = vmatprep.subr.bf16.mxu0 0
    %68 = vmatpush1.bf16.msra.mxu0 0
    %69 = vmatprep.subr.bf16.mxu0 0
    %70 = vmatpush1.bf16.msra.mxu0 0
    %71 = vmatprep.subr.bf16.mxu0 0
    %72 = vmatpush1.bf16.msra.mxu0 0
    %73 = vmatprep.subr.bf16.mxu0 0
    %74 = vmatpush1.bf16.msra.mxu0 0
    %75 = vmatprep.subr.bf16.mxu0 0
    %76 = vmatpush1.bf16.msra.mxu0 0
    %77 = vmatprep.subr.bf16.mxu0 0
    %78 = vmatpush1.bf16.msra.mxu0 0
    %79 = vmatprep.subr.bf16.mxu0 0
    %80 = vmatpush1.bf16.msra.mxu0 0
    %81 = vmatprep.subr.bf16.mxu0 0
    %82 = vmatpush1.bf16.msra.mxu0 0
    %83 = vmatprep.subr.bf16.mxu0 0
    %84 = vmatpush1.bf16.msra.mxu0 0
    %85 = vmatprep.subr.bf16.mxu0 0
    %86 = vmatpush1.bf16.msra.mxu0 0
    %87 = vmatprep.subr.bf16.mxu0 0
    %88 = vmatpush1.bf16.msra.mxu0 0
    %89 = vmatprep.subr.bf16.mxu0 0
    %90 = vmatpush1.bf16.msra.mxu0 0
    %91 = vmatprep.mubr.bf16.mxu0 0
    %92 = vmatmul.mubr.bf16.gmra.mrb[0].mxu0 %v57
    %v93 = vpop.f32.mrb[0].mxu0
    %v94 = vadd.f32 %v36, %v93
    %v95 = vpop.f32.mrb[0].mxu0
    %v96 = vpop.f32.mrb[0].mxu0
    %v97 = vadd.f32 %v36, %v96
    %v98 = vpop.f32.mrb[0].mxu0
    %99 = vdwg.mxu0
    %v100 = vlaneseq
    %v101 = vand.u32 %v100, 127
    %vm102 = vcmp.lt.s32.totalorder %v101, 4
    %v103 = vsel %vm102, %v94, -inf
    %v104 = vsel %vm102, %v97, -inf
    %105 = vmax.xlane.f32.xlu0 %v103
    %v106 = vpop.xlane.xlu0 %105
    %107 = vmax.xlane.f32.xlu0 %v104
    %v108 = vpop.xlane.xlu0 %107
    %v109 = vsub.f32 %v103, %v106
    %v110 = vsub.f32 %v104, %v108
    %v111 = vmul.f32 %v109, 1.442695
    %v112 = vpow.pop %v111
    %v113 = vmul.f32 %v110, 1.442695
    %v114 = vpow.pop %v113
    %115 = vadd.xlane.f32.xlu0 %v112
    %v116 = vpop.xlane.xlu0 %115
    %117 = vadd.xlane.f32.xlu0 %v114
    %v118 = vpop.xlane.xlu0 %117
    %v119 = vlog2.pop %v116
    %v120 = vmul.f32 %v119, 0.6931472
    %v121 = vlog2.pop %v118
    %v122 = vmul.f32 %v121, 0.6931472
    %v123 = vadd.f32 %v106, %v120
    %v124 = vadd.f32 %v108, %v122
    %v125 = vld [vmem:[%s3] sm:$0xff]
    %v126 = vld [vmem:[%s3 + $0x8] sm:$0xff]
    %127 = vset.pattern.permute.xlu0 0
    %128 = vperm.xlu0 %127, %v125
    %v129 = vpop.permute.xlu0 %128
    %130 = vset.pattern.permute.xlu0 0
    %131 = vperm.xlu0 %130, %v126
    %v132 = vpop.permute.xlu0 %131
    %vm133 = vcmp.eq.s32.totalorder %v101, %v129
    %vm134 = vcmp.eq.s32.totalorder %v101, %v132
    %vm135 = vmand %vm133, %vm102
    %vm136 = vmand %vm134, %vm102
    %v137 = vsel %vm135, 1, 0
    %v138 = vsel %vm136, 1, 0
    %v139 = vcvt.s32.f32 %v137
    %v140 = vcvt.s32.f32 %v138
    %v141 = vmul.f32 %v94, %v139
    %v142 = vmul.f32 %v97, %v140
    %143 = vadd.xlane.f32.xlu0 %v141
    %v144 = vpop.xlane.xlu0 %143
    %145 = vadd.xlane.f32.xlu0 %v142
    %v146 = vpop.xlane.xlu0 %145
    %v147 = vsub.f32 %v123, %v144
    %v148 = vsub.f32 %v124, %v146
    %v149 = vld [vmem:[%s4] sm:$0xff]
    %v150 = vld [vmem:[%s4 + $0x8] sm:$0xff]
    %v151 = vmul.f32 %v149, %v147
    %v152 = vmul.f32 %v150, %v148
    %v153 = vsel %vm102, %v94, 0.0
    %v154 = vsel %vm102, %v97, 0.0
    %v155 = vpack.c.bf16 %v154, %v153
    %v157 = vunpack.c.l.b16 %v155
    %v158 = vunpack.c.h.b16 %v155
    %v159 = vpack.c.b16 %v157, %v157
    %v160 = vpack.c.b16 %v158, %v158
    %163 = vst [vmem:[#allocation2] sm:$0xf] %v159
    %164 = vst [vmem:[#allocation2 + $0x4] sm:$0xf] %v160
    %vm165 = vcmask 7168
    %v166 = vsel %vm165, %v151, 0.0
    %v167 = vsel %vm165, %v152, 0.0
    %v168 = vadd.f32 %v166, %v167
    %169 = vadd.xlane.f32.xlu0 %v168
    %v170 = vpop.xlane.xlu0 %169
    %v171 = vrot.slane %v170, 4
    %v172 = vadd.f32 %v170, %v171
    %v173 = vrot.slane %v172, 2
    %v174 = vadd.f32 %v172, %v173
    %v175 = vrot.slane %v174, 1
    %v176 = vadd.f32 %v174, %v175
    %s177 = vtos %v176
    %vm178 = vcmp.eq.s32.totalorder %v101, 0
    %v179 = vstv %s177
    %v180 = vsel %vm178, %v179, 0.0
    %181 = vst [vmem:[#allocation4] sm:$0x1] %v180
    // Predicated region
    $region22: #{tpu_custom_call.1} parent=1 // pred_check
      _
    $region23: #{tpu_custom_call.1} parent=1 // pred_check_branch
      %183 = sbr.rel (0) target = $region25
    $region24: #{tpu_custom_call.1} parent=1 // pred_region
      %s185 = ssub.s32 128, 128
      %186 = vsyncadd [#allocation3], %s185
      %s187 = sshll.u32 [#allocation2], 4
      %s188 = int_to_ptr.vmem [resolvable:$true] %s187
      %193 = dma.vmem_to_hbm [thread:$0]  %s188, 128, %s5, [#allocation3], 64, 64, 4
    $region25: #{tpu_custom_call.1} parent=1 // pred_fallthru
      _
    // Predicated region
    $region26: #{tpu_custom_call.1} parent=1 // pred_check
      _
    $region27: #{tpu_custom_call.1} parent=1 // pred_check_branch
      %195 = sbr.rel (0) target = $region29
    $region28: #{tpu_custom_call.1} parent=1 // pred_region
      %s197 = ssub.s32 16, 16
      %198 = vsyncadd [#allocation5], %s197
      %s200 = sshll.u32 [#allocation4], 4
      %s201 = int_to_ptr.vmem [resolvable:$true] %s200
      %203 = dma.vmem_to_hbm [thread:$0]  %s201, 16, %s6, [#allocation5]
    $region29: #{tpu_custom_call.1} parent=1 // pred_fallthru
      _
    // Predicated region
    $region30: #{tpu_custom_call.1} parent=1 // pred_check
      _
    $region31: #{tpu_custom_call.1} parent=1 // pred_check_branch
      %205 = sbr.rel (0) target = $region33
    $region32: #{tpu_custom_call.1} parent=1 // pred_region
      %206 = dma.done [#allocation3], 128
    $region33: #{tpu_custom_call.1} parent=1 // pred_fallthru
      _
    // Predicated region
    $region34: #{tpu_custom_call.1} parent=1 // pred_check
      _
    $region35: #{tpu_custom_call.1} parent=1 // pred_check_branch
      %208 = sbr.rel (0) target = $region37
    $region36: #{tpu_custom_call.1} parent=1 // pred_region
      %209 = dma.done [#allocation5], 16
    $region37: #{tpu_custom_call.1} parent=1 // pred_fallthru
      _
    %210 = vsyncpa [#allocation3], 1
    %211 = vsyncpa [#allocation5], 1

</llo_original>
